<compile_context>
chip_gen: v7x
topology: tpu7x:2x2x1
jax: 0.10.0
libtpu: 0.0.40
codegen_flags: <defaults>
</compile_context>

<pallas_src>
import functools

import numpy as np
import jax
import jax.numpy as jnp
from jax.experimental import pallas as pl
from jax.experimental.pallas import tpu as pltpu


# ----------------------------------------------------------------------------
# Tiling helpers
# ----------------------------------------------------------------------------
def _round_up(x, m):
    return ((x + m - 1) // m) * m


def _pick_row_tile(n, cap=512):
    """Row-tile size: multiple of 8 (sublane) or the full N; at least 2 grid
    steps when possible so v7x's two TensorCores both get work. `cap` bounds
    VMEM (cap=1024 is fine on v5e/v6e when channel counts are small)."""
    if n <= 8:
        return n
    if n <= 2 * cap:
        return min(cap, _round_up(pl.cdiv(n, 2), 8))
    return cap


def _pick_k_tile(cin, cap=512):
    """Cin (contraction) tile: either the whole Cin or a multiple-of-128
    divisor of Cin, so no partially padded (garbage) K block ever reaches the
    accumulator."""
    if cin <= cap:
        return cin
    t = (cap // 128) * 128
    while t >= 128:
        if cin % t == 0:
            return t
        t -= 128
    return cin  # no aligned divisor found: single K block (more VMEM, still correct)


# ----------------------------------------------------------------------------
# Kernel
# ----------------------------------------------------------------------------
def _finalize(qkv, seg, o_ref, *, scale, cp):
    """qkv: (tile_n, 3*cp) f32 projections; seg: (cp, cp) block-diagonal ones."""
    q = qkv[:, 0 * cp:1 * cp]          # 128-aligned lane slices -> no relayout
    k = qkv[:, 1 * cp:2 * cp]
    v = qkv[:, 2 * cp:3 * cp]

    # einsum('bhq,bhk->bhk'): per-head sum of q broadcast back to D lanes,
    # done on the MXU (segment-sum) instead of per-head XLU reductions.
    qsum = jnp.dot(q, seg, preferred_element_type=jnp.float32)     # (tile_n, cp)
    score = qsum * k * scale

    # Stable softmax: one full-width row max is shift-equivalent to the
    # reference's per-head max.
    m = jnp.max(score, axis=-1, keepdims=True)
    e = jnp.exp(score - m)
    denom = jnp.dot(e, seg, preferred_element_type=jnp.float32)    # per-head sum(e)

    # out = (sum_k attn) * v ; attn itself is never materialized. Guard against
    # total per-head underflow (true softmax still sums to 1 there).
    # pl.reciprocal(..., approx=True) is available if this ever becomes
    # VALU-bound; exact keeps the f32 path within ~1e-6 of the reference.
    asum = jnp.where(denom > 0.0,
                     denom * pl.reciprocal(denom, approx=False),
                     1.0)
    o_ref[...] = (asum * v).astype(o_ref.dtype)


def _spatial_attention_kernel(x_ref, w_ref, b_ref, seg_ref, o_ref, *scratch,
                              scale, cp, n_k):
    if n_k == 1:
        # Single K block: one fused QKV GEMM, no accumulator round-trip.
        qkv = jnp.dot(x_ref[...], w_ref[...],
                      preferred_element_type=jnp.float32) + b_ref[...]
        _finalize(qkv, seg_ref[...], o_ref, scale=scale, cp=cp)
    else:
        acc_ref, = scratch
        k = pl.program_id(1)

        @pl.when(k == 0)
        def _():
            acc_ref[...] = jnp.zeros_like(acc_ref)

        acc_ref[...] += jnp.dot(x_ref[...], w_ref[...],
                                preferred_element_type=jnp.float32)

        @pl.when(k == n_k - 1)
        def _():
            _finalize(acc_ref[...] + b_ref[...], seg_ref[...], o_ref,
                      scale=scale, cp=cp)


# ----------------------------------------------------------------------------
# Parameter prep (run ONCE, not per forward call) + apply
# ----------------------------------------------------------------------------
def prepare_spatial_attention_params(wq, wk, wv, bq, bk, bv, num_heads,
                                     compute_dtype=jnp.float32):
    """Fuse Q/K/V into one (Cin, 3*Cp) matrix (torch Linear: y = x @ W.T + b),
    pad each Cout block to a multiple of 128 lanes (unmasked stores / aligned
    slices), and build the block-diagonal segment-sum matrix used for per-head
    reductions on the MXU."""
    cout, cin = wq.shape
    assert cout % num_heads == 0, "out_channels must be divisible by num_heads"
    d = cout // num_heads
    cp = _round_up(cout, 128)
    pad = cp - cout

    def pad_w(w):                      # (Cout, Cin) -> (Cin, Cp)
        return jnp.pad(w.T, ((0, 0), (0, pad)))

    def pad_b(b):
        return jnp.pad(b, (0, pad))

    w_fused = jnp.concatenate([pad_w(wq), pad_w(wk), pad_w(wv)],
                              axis=1).astype(compute_dtype)          # (Cin, 3*Cp)
    b_fused = jnp.concatenate([pad_b(bq), pad_b(bk), pad_b(bv)]
                              ).reshape(1, 3 * cp).astype(jnp.float32)

    # seg[i, j] = 1 iff lanes i and j belong to the same head. Padded lanes get
    # an identity entry so their softmax denominator stays finite (their output
    # is exactly 0 and is sliced off in the wrapper anyway).
    lane = jnp.arange(cp)
    head_id = jnp.where(lane < cout, lane // d, cout + lane)
    seg = (head_id[:, None] == head_id[None, :]).astype(jnp.float32)  # (Cp, Cp)
    # TODO(synk): for very large Cout, factor seg as (Cp,H)@(H,Cp) or store it
    # in bf16 to bound its VMEM footprint.

    return dict(w=w_fused, b=b_fused, seg=seg, cin=cin, cout=cout, cp=cp,
                scale=float(d) ** -0.5, compute_dtype=compute_dtype)


def spatial_attention_apply(params, x, edge_index=None, *, row_tile_cap=512):
    del edge_index  # unused by the reference forward; kept for signature parity
    n, cin = x.shape
    assert cin == params["cin"]
    cp, cout = params["cp"], params["cout"]
    cdtype = params["compute_dtype"]
    out_dtype = x.dtype

    # Ideally the caller already provides activations in compute_dtype (bf16);
    # casting here costs one extra HBM pass over x.
    xs = x if x.dtype == cdtype else x.astype(cdtype)

    tile_n = _pick_row_tile(n, row_tile_cap)
    tile_k = _pick_k_tile(cin)
    n_i = pl.cdiv(n, tile_n)
    n_k = cin // tile_k

    kernel = functools.partial(_spatial_attention_kernel,
                               scale=params["scale"], cp=cp, n_k=n_k)
    scratch = [] if n_k == 1 else [pltpu.VMEM((tile_n, 3 * cp), jnp.float32)]

    # Explicit scoped-VMEM budget: double-buffered blocks + accumulator +
    # generous allowance for the f32 temporaries in the finalize step.
    csize = np.dtype(cdtype).itemsize
    est = (2 * tile_n * tile_k * csize          # x blocks
           + 2 * tile_k * 3 * cp * csize        # fused-weight blocks
           + 2 * 3 * cp * 4                     # bias
           + 2 * cp * cp * 4                    # segment-sum matrix
           + 2 * tile_n * cp * 4                # output blocks
           + tile_n * 3 * cp * 4                # accumulator
           + 12 * tile_n * cp * 4)              # finalize temporaries
    vmem_limit = int(min(120 * 1024 * 1024, 2 * est + (8 << 20)))

    # NOTE: when n_k == 1 the weight/bias/seg block indices are constant and
    # could be single-buffered (pipeline_mode=pl.Buffered(1)) to halve their
    # VMEM footprint on v7x; K-tiling already bounds the weight block here.
    out = pl.pallas_call(
        kernel,
        out_shape=jax.ShapeDtypeStruct((n, cp), out_dtype),
        grid=(n_i, n_k),
        in_specs=[
            pl.BlockSpec((tile_n, tile_k), lambda i, k: (i, k)),   # x row/K tile
            pl.BlockSpec((tile_k, 3 * cp), lambda i, k: (k, 0)),   # fused weights
            pl.BlockSpec((1, 3 * cp), lambda i, k: (0, 0)),        # fused bias
            pl.BlockSpec((cp, cp), lambda i, k: (0, 0)),           # segment-sum
        ],
        out_specs=pl.BlockSpec((tile_n, cp), lambda i, k: (i, 0)), # lane-dense rows
        scratch_shapes=scratch,
        compiler_params=pltpu.CompilerParams(
            dimension_semantics=("parallel", "arbitrary"),
            vmem_limit_bytes=vmem_limit),
    )(xs, params["w"], params["b"], params["seg"])

    return out if cp == cout else out[:, :cout]


def spatial_attention_pallas(x, wq, wk, wv, bq, bk, bv, num_heads,
                             edge_index=None, compute_dtype=jnp.float32):
    """Convenience one-shot wrapper; for real use call prepare_* once and reuse
    the prepared params across forward calls."""
    params = prepare_spatial_attention_params(wq, wk, wv, bq, bk, bv, num_heads,
                                              compute_dtype)
    return spatial_attention_apply(params, x, edge_index)


# ----------------------------------------------------------------------------
# Plain-JAX reference + self-test
# ----------------------------------------------------------------------------
def spatial_attention_reference(x, wq, wk, wv, bq, bk, bv, num_heads):
    """Plain-JAX transcription of the PyTorch forward (for verification)."""
    hp = jax.lax.Precision.HIGHEST
    n = x.shape[0]
    cout = wq.shape[0]
    d = cout // num_heads
    scale = float(d) ** -0.5
    q = (jnp.dot(x, wq.T, precision=hp) + bq).reshape(n, num_heads, d)
    k = (jnp.dot(x, wk.T, precision=hp) + bk).reshape(n, num_heads, d)
    v = (jnp.dot(x, wv.T, precision=hp) + bv).reshape(n, num_heads, d)
    score = jnp.einsum('bhq,bhk->bhk', q, k, precision=hp) * scale
    attn = jax.nn.softmax(score, axis=-1)
    out = jnp.einsum('bhk,bhv->bhv', attn, v, precision=hp)
    return out.reshape(n, cout)


def _run_case(n, cin, cout, heads, compute_dtype, atol, rtol):
    key = jax.random.PRNGKey(0)
    ks = jax.random.split(key, 8)
    x = jax.random.normal(ks[0], (n, cin), jnp.float32)
    bound = 1.0 / (cin ** 0.5)   # torch.nn.Linear default init range
    wq = jax.random.uniform(ks[1], (cout, cin), jnp.float32, -bound, bound)
    wk = jax.random.uniform(ks[2], (cout, cin), jnp.float32, -bound, bound)
    wv = jax.random.uniform(ks[3], (cout, cin), jnp.float32, -bound, bound)
    bq = jax.random.uniform(ks[4], (cout,), jnp.float32, -bound, bound)
    bk = jax.random.uniform(ks[5], (cout,), jnp.float32, -bound, bound)
    bv = jax.random.uniform(ks[6], (cout,), jnp.float32, -bound, bound)
    edge_index = jax.random.randint(ks[7], (2, 2 * n), 0, n)  # unused by forward

    params = prepare_spatial_attention_params(wq, wk, wv, bq, bk, bv, heads,
                                              compute_dtype)
    out = jax.block_until_ready(spatial_attention_apply(params, x, edge_index))
    ref = spatial_attention_reference(x, wq, wk, wv, bq, bk, bv, heads)
    assert out.shape == (n, cout), (out.shape, (n, cout))
    err = float(jnp.max(jnp.abs(out - ref)))
    assert jnp.allclose(out, ref, atol=atol, rtol=rtol), (
        f"mismatch (N={n}, Cin={cin}, Cout={cout}, H={heads}, "
        f"compute_dtype={compute_dtype}): max abs err {err}")


if __name__ == "__main__":
    # Small shapes consistent with the module (N nodes x in_channels features).
    _run_case(n=16, cin=8, cout=8, heads=2, compute_dtype=jnp.float32,
              atol=1e-4, rtol=1e-4)
    # bf16-fed MXU path (streamed x / fused weights halved); looser tolerance.
    _run_case(n=16, cin=8, cout=8, heads=2, compute_dtype=jnp.bfloat16,
              atol=5e-2, rtol=5e-2)
    # Exercises the Cin (K) reduction axis + multi-row-tile grid, no lane padding.
    _run_case(n=128, cin=768, cout=256, heads=8, compute_dtype=jnp.float32,
              atol=1e-4, rtol=1e-4)
    print("KERNEL_OK")
</pallas_src>

<mosaic_0001>
module attributes {stable_mosaic.version = 11 : i64} {
  func.func @_spatial_attention_kernel(%arg0: i32, %arg1: i32, %arg2: memref<8x8xf32, #tpu.memory_space<vmem>>, %arg3: memref<8x384xf32, #tpu.memory_space<vmem>>, %arg4: memref<1x384xf32, #tpu.memory_space<vmem>>, %arg5: memref<128x128xf32, #tpu.memory_space<vmem>>, %arg6: memref<8x128xf32, #tpu.memory_space<vmem>>) attributes {dimension_semantics = [#tpu.dimension_semantics<parallel>, #tpu.dimension_semantics<arbitrary>], iteration_bounds = array<i64: 2, 1>, scalar_prefetch = 0 : i64, scratch_operands = 0 : i64, tpu.core_type = #tpu.core_type<tc>, window_params = [{transform_indices = @transform_0, window_bounds = array<i64: 8, 8>}, {transform_indices = @transform_1, window_bounds = array<i64: 8, 384>}, {pipeline_mode = #tpu.pipeline_mode<synchronous>, transform_indices = @transform_2, window_bounds = array<i64: 1, 384>}, {pipeline_mode = #tpu.pipeline_mode<synchronous>, transform_indices = @transform_3, window_bounds = array<i64: 128, 128>}, {transform_indices = @transform_4, window_bounds = array<i64: 8, 128>}]} {
    %c0 = arith.constant 0 : index
    %c0_0 = arith.constant 0 : index
    %0 = vector.load %arg2[%c0, %c0_0] : memref<8x8xf32, #tpu.memory_space<vmem>>, vector<8x8xf32>
    %c0_1 = arith.constant 0 : index
    %c0_2 = arith.constant 0 : index
    %1 = vector.load %arg3[%c0_1, %c0_2] : memref<8x384xf32, #tpu.memory_space<vmem>>, vector<8x384xf32>
    %cst = arith.constant dense<0.000000e+00> : vector<8x384xf32>
    %2 = tpu.matmul %0, %1, %cst {dimension_numbers = #tpu.dot_dimension_numbers<[1], [0], [0], [1], [0, 0, 1, 1], [], []>} : vector<8x8xf32>, vector<8x384xf32>, vector<8x384xf32> -> vector<8x384xf32>
    %c0_3 = arith.constant 0 : index
    %c0_4 = arith.constant 0 : index
    %3 = vector.load %arg4[%c0_3, %c0_4] : memref<1x384xf32, #tpu.memory_space<vmem>>, vector<1x384xf32>
    %4 = vector.broadcast %3 : vector<1x384xf32> to vector<8x384xf32>
    %5 = arith.addf %2, %4 : vector<8x384xf32>
    %c0_5 = arith.constant 0 : index
    %c0_6 = arith.constant 0 : index
    %6 = vector.load %arg5[%c0_5, %c0_6] : memref<128x128xf32, #tpu.memory_space<vmem>>, vector<128x128xf32>
    %7 = vector.extract_strided_slice %5 {offsets = [0, 0], sizes = [8, 128], strides = [1, 1]} : vector<8x384xf32> to vector<8x128xf32>
    %8 = vector.extract_strided_slice %5 {offsets = [0, 128], sizes = [8, 128], strides = [1, 1]} : vector<8x384xf32> to vector<8x128xf32>
    %9 = vector.extract_strided_slice %5 {offsets = [0, 256], sizes = [8, 128], strides = [1, 1]} : vector<8x384xf32> to vector<8x128xf32>
    %cst_7 = arith.constant dense<0.000000e+00> : vector<8x128xf32>
    %10 = tpu.matmul %7, %6, %cst_7 {dimension_numbers = #tpu.dot_dimension_numbers<[1], [0], [0], [1], [0, 0, 1, 1], [], []>} : vector<8x128xf32>, vector<128x128xf32>, vector<8x128xf32> -> vector<8x128xf32>
    %11 = arith.mulf %10, %8 : vector<8x128xf32>
    %cst_8 = arith.constant 5.000000e-01 : f32
    %12 = vector.broadcast %cst_8 : f32 to vector<8x128xf32>
    %13 = arith.mulf %11, %12 : vector<8x128xf32>
    %cst_9 = arith.constant dense<0xFF800000> : vector<8xf32>
    %14 = vector.multi_reduction <maximumf>, %13, %cst_9 [1] : vector<8x128xf32> to vector<8xf32>
    %15 = vector.shape_cast %14 : vector<8xf32> to vector<8x1xf32>
    %16 = vector.broadcast %15 : vector<8x1xf32> to vector<8x128xf32>
    %17 = arith.subf %13, %16 : vector<8x128xf32>
    %18 = math.exp %17 : vector<8x128xf32>
    %cst_10 = arith.constant dense<0.000000e+00> : vector<8x128xf32>
    %19 = tpu.matmul %18, %6, %cst_10 {dimension_numbers = #tpu.dot_dimension_numbers<[1], [0], [0], [1], [0, 0, 1, 1], [], []>} : vector<8x128xf32>, vector<128x128xf32>, vector<8x128xf32> -> vector<8x128xf32>
    %cst_11 = arith.constant 0.000000e+00 : f32
    %20 = vector.broadcast %cst_11 : f32 to vector<8x128xf32>
    %21 = arith.cmpf ogt, %19, %20 : vector<8x128xf32>
    %22 = tpu.reciprocal %19 : vector<8x128xf32> -> vector<8x128xf32>
    %23 = arith.mulf %19, %22 : vector<8x128xf32>
    %cst_12 = arith.constant 1.000000e+00 : f32
    %24 = vector.broadcast %cst_12 : f32 to vector<8x128xf32>
    %25 = arith.select %21, %23, %24 : vector<8x128xi1>, vector<8x128xf32>
    %26 = arith.mulf %25, %9 : vector<8x128xf32>
    %c0_13 = arith.constant 0 : index
    %c0_14 = arith.constant 0 : index
    %27 = vector.load %arg6[%c0_13, %c0_14] : memref<8x128xf32, #tpu.memory_space<vmem>>, vector<8x128xf32>
    tpu.vector_store %arg6[%c0_13, %c0_14], %26 {strides = array<i32>} : memref<8x128xf32, #tpu.memory_space<vmem>>, vector<8x128xf32>,
    return
  }
  func.func @transform_0(%arg0: i32, %arg1: i32) -> (i32, i32) {
    %c0_i32 = arith.constant 0 : i32
    return %arg0, %arg1 : i32, i32
  }
  func.func @transform_1(%arg0: i32, %arg1: i32) -> (i32, i32) {
    %c0_i32 = arith.constant 0 : i32
    %c0_i32_0 = arith.constant 0 : i32
    return %arg1, %c0_i32 : i32, i32
  }
  func.func @transform_2(%arg0: i32, %arg1: i32) -> (i32, i32) {
    %c0_i32 = arith.constant 0 : i32
    %c0_i32_0 = arith.constant 0 : i32
    %c0_i32_1 = arith.constant 0 : i32
    return %c0_i32, %c0_i32_0 : i32, i32
  }
  func.func @transform_3(%arg0: i32, %arg1: i32) -> (i32, i32) {
    %c0_i32 = arith.constant 0 : i32
    %c0_i32_0 = arith.constant 0 : i32
    %c0_i32_1 = arith.constant 0 : i32
    return %c0_i32, %c0_i32_0 : i32, i32
  }
  func.func @transform_4(%arg0: i32, %arg1: i32) -> (i32, i32) {
    %c0_i32 = arith.constant 0 : i32
    %c0_i32_0 = arith.constant 0 : i32
    return %arg0, %c0_i32 : i32, i32
  }
}

</mosaic_0001>

<llo_original>
// kernel: tpu_custom_call.1
$region0: #{tpu_custom_call.1}
  #allocation0 [shape = 'u32[]', space=smem, size = 0x4, offset = 0x4, fixed_abs, tag = 'smem constant byte address 0x4 - core index']
  #allocation1 [shape = 'u32[144,128]{1,0:T(1,128)}', space=vmem, size = 0x12000, scoped, tag = 'internal scratch']
  %s0 = inlined_call_operand.vmem [shape: f32[16,8], index: 0, kind: input, shape index: {}]
  %s1 = inlined_call_operand.vmem [shape: f32[8,384], index: 1, kind: input, shape index: {}]
  %s2 = inlined_call_operand.vmem [shape: f32[1,384], index: 2, kind: input, shape index: {}]
  %s3 = inlined_call_operand.hbm [shape: f32[128,128], index: 3, kind: input, shape index: {}]
  %s4 = inlined_call_operand.hbm [shape: f32[16,128], index: 4, kind: output, shape index: {}]
  %s5 = sld [smem:[#allocation0]]
  $region53: #{tpu_custom_call.1} parent=0
    _
  %s7 = ssub.s32 1, %s5
  %s8 = scalar_select 0, %s7, %s5
  $region1: #{tpu_custom_call.1} parent=0
    #allocation2 [shape = 'u8[65536]{0}', space=vmem, size = 0x10000, scoped, tag = 'input window, operand 3, single buffered']
    #allocation3 [shape = 's32[2]{0}', space=sflag, size = 0x8, scoped, tag = 'scoped memory for tpu_custom_call.1']
    #allocation4 [shape = 's32[2]{0}', space=sflag, size = 0x8, scoped, tag = 'scoped memory for tpu_custom_call.1']
    #allocation5 [shape = 'u8[8192]{0}', space=vmem, size = 0x2000, scoped, tag = 'output window, operand 0']
    %9 = vsyncpa [#allocation3], 0
    %10 = vsyncpa [#allocation4], 0
    %s11 = scalar_lea.sflag [#allocation4], 1
    %12 = vsyncpa %s11, 0
    loop: start=0, step=1, limit=4
    $region2: #{tpu_custom_call.1} parent=1 // loop_pre_header
      _
    $region3: #{tpu_custom_call.1} parent=1 // loop_header
      %s14 = sphi 0, %s18
      %p15 = scmp.ge.s32.totalorder %s14, 4
      %s21 = sphi 0, %s33
      %s22 = sphi 0, %s29
      %s23 = sphi 0, %s21
      %s24 = sphi 0, %s22
      %s25 = sphi 0, %s23
      %s26 = sphi 0, %s24
      %s38 = sphi 0, %s40
      %s41 = sphi 0, %s38
      %s42 = sphi 0, %s41
      %s58 = sphi 0, %s42
      %s64 = sphi 0, %s66
      %s67 = sphi 0, %s64
      %s68 = sphi 0, %s67
      %s84 = sphi 0, %s68
      %s88 = sphi 0, %s88
      %s90 = sphi 0, %s88
      %s91 = sphi 0, %s90
      %s105 = sphi 0, %s91
      %s109 = sphi 0, %s109
      %s111 = sphi 0, %s109
      %s112 = sphi 0, %s111
      %s126 = sphi 0, %s112
      %s132 = sphi 0, %s134
      %s135 = sphi 0, %s132
      %s136 = sphi 0, %s135
      %s152 = sphi 0, %s136
    $region4: #{tpu_custom_call.1} parent=1 // loop_header_branch
      %17 = sbr.rel (%p15) target = $region8
    $region5: #{tpu_custom_call.1} parent=1 // loop_body
      %s19 = ssub.s32 %s14, 1
      %s20 = ssub.s32 %s14, 2
      %s27 = sadd.s32 1, %s22
      %p28 = scmp.ge.s32.totalorder %s27, 1
      %s29 = scalar_select %p28, 0, %s27
      %s30 = sadd.s32 1, %s21
      %s31 = scalar_select %p28, %s30, %s21
      %p32 = scmp.ge.s32.totalorder %s31, 2
      %s33 = scalar_select %p32, 0, %s31
      %s34 = ssub.s32 %s21, %s33
      %s35 = ssub.s32 %s22, %s29
      %s36 = sor.u32 %s34, %s35
      %p37 = scmp.eq.s32.totalorder %s36, 0
      %s39 = sadd.s32 %s38, 1
      %s40 = scalar_select %p37, %s38, %s39
      %p43 = pneg %p37
      %p44 = scmp.eq.s32.totalorder %s14, 1
      %p45 = por %p43, %p44
      %p46 = scmp.ne.s32.totalorder %s38, %s41
      %p47 = scmp.eq.s32.totalorder %s14, 0
      %p48 = por %p46, %p47
      %p49 = scmp.ne.s32.totalorder %s38, %s41
      %p50 = scmp.eq.s32.totalorder %s19, 1
      %p51 = por %p49, %p50
      %p52 = scmp.ne.s32.totalorder %s41, %s42
      %p53 = scmp.eq.s32.totalorder %s19, 0
      %p54 = por %p52, %p53
      %p55 = scmp.ne.s32.totalorder %s41, %s42
      %p56 = scmp.eq.s32.totalorder %s20, 1
      %p57 = por %p55, %p56
      %p59 = scmp.ne.s32.totalorder %s42, %s58
      %p60 = scmp.eq.s32.totalorder %s20, 0
      %p61 = por %p59, %p60
      %s62 = ssub.s32 %s22, %s29
      %p63 = scmp.eq.s32.totalorder %s62, 0
      %s65 = sadd.s32 %s64, 1
      %s66 = scalar_select %p63, %s64, %s65
      %p69 = pneg %p63
      %p70 = scmp.eq.s32.totalorder %s14, 1
      %p71 = por %p69, %p70
      %p72 = scmp.ne.s32.totalorder %s64, %s67
      %p73 = scmp.eq.s32.totalorder %s14, 0
      %p74 = por %p72, %p73
      %p75 = scmp.ne.s32.totalorder %s64, %s67
      %p76 = scmp.eq.s32.totalorder %s19, 1
      %p77 = por %p75, %p76
      %p78 = scmp.ne.s32.totalorder %s67, %s68
      %p79 = scmp.eq.s32.totalorder %s19, 0
      %p80 = por %p78, %p79
      %p81 = scmp.ne.s32.totalorder %s67, %s68
      %p82 = scmp.eq.s32.totalorder %s20, 1
      %p83 = por %p81, %p82
      %p85 = scmp.ne.s32.totalorder %s68, %s84
      %p86 = scmp.eq.s32.totalorder %s20, 0
      %p87 = por %p85, %p86
      %s89 = sadd.s32 %s88, 1
      %p92 = scmp.eq.s32.totalorder %s14, 1
      %p93 = scmp.ne.s32.totalorder %s88, %s90
      %p94 = scmp.eq.s32.totalorder %s14, 0
      %p95 = por %p93, %p94
      %p96 = scmp.ne.s32.totalorder %s88, %s90
      %p97 = scmp.eq.s32.totalorder %s19, 1
      %p98 = por %p96, %p97
      %p99 = scmp.ne.s32.totalorder %s90, %s91
      %p100 = scmp.eq.s32.totalorder %s19, 0
      %p101 = por %p99, %p100
      %p102 = scmp.ne.s32.totalorder %s90, %s91
      %p103 = scmp.eq.s32.totalorder %s20, 1
      %p104 = por %p102, %p103
      %p106 = scmp.ne.s32.totalorder %s91, %s105
      %p107 = scmp.eq.s32.totalorder %s20, 0
      %p108 = por %p106, %p107
      %s110 = sadd.s32 %s109, 1
      %p113 = scmp.eq.s32.totalorder %s14, 1
      %p114 = scmp.ne.s32.totalorder %s109, %s111
      %p115 = scmp.eq.s32.totalorder %s14, 0
      %p116 = por %p114, %p115
      %p117 = scmp.ne.s32.totalorder %s109, %s111
      %p118 = scmp.eq.s32.totalorder %s19, 1
      %p119 = por %p117, %p118
      %p120 = scmp.ne.s32.totalorder %s111, %s112
      %p121 = scmp.eq.s32.totalorder %s19, 0
      %p122 = por %p120, %p121
      %p123 = scmp.ne.s32.totalorder %s111, %s112
      %p124 = scmp.eq.s32.totalorder %s20, 1
      %p125 = por %p123, %p124
      %p127 = scmp.ne.s32.totalorder %s112, %s126
      %p128 = scmp.eq.s32.totalorder %s20, 0
      %p129 = por %p127, %p128
      %s130 = ssub.s32 %s21, %s33
      %p131 = scmp.eq.s32.totalorder %s130, 0
      %s133 = sadd.s32 %s132, 1
      %s134 = scalar_select %p131, %s132, %s133
      %p137 = pneg %p131
      %p138 = scmp.eq.s32.totalorder %s14, 1
      %p139 = por %p137, %p138
      %p140 = scmp.ne.s32.totalorder %s132, %s135
      %p141 = scmp.eq.s32.totalorder %s14, 0
      %p142 = por %p140, %p141
      %p143 = scmp.ne.s32.totalorder %s132, %s135
      %p144 = scmp.eq.s32.totalorder %s19, 1
      %p145 = por %p143, %p144
      %p146 = scmp.ne.s32.totalorder %s135, %s136
      %p147 = scmp.eq.s32.totalorder %s19, 0
      %p148 = por %p146, %p147
      %p149 = scmp.ne.s32.totalorder %s135, %s136
      %p150 = scmp.eq.s32.totalorder %s20, 1
      %p151 = por %p149, %p150
      %p153 = scmp.ne.s32.totalorder %s136, %s152
      %p154 = scmp.eq.s32.totalorder %s20, 0
      %p155 = por %p153, %p154
      %p156 = scmp.le.s32.totalorder 1, %s14
      %p157 = scmp.lt.s32.totalorder %s14, 3
      %p158 = pnand %p156, %p157
      %p159 = pneg %p158
      // Predicated region
      $region9: #{tpu_custom_call.1} parent=5 // pred_check
        _
      $region10: #{tpu_custom_call.1} parent=5 // pred_check_branch
        %161 = sbr.rel (%p158) target = $region12
      $region11: #{tpu_custom_call.1} parent=5 // pred_region
        %s162 = ssub.s32 %s14, 1
        // Predicated region
        $region13: #{tpu_custom_call.1} parent=11 // pred_check
          %p163 = pneg %p80
        $region14: #{tpu_custom_call.1} parent=11 // pred_check_branch
          %165 = sbr.rel (%p163) target = $region16
        $region15: #{tpu_custom_call.1} parent=11 // pred_region
          %p166 = scmp.lt.s32.totalorder %s24, 0
          %s167 = scalar_select %p166, %s24, 0
          %s168 = smul.addr %s167, 3
          %s169 = smul.addr %s168, 8
          %s170 = scalar_lea.vmem %s1, %s169
        $region16: #{tpu_custom_call.1} parent=11 // pred_fallthru
          _
        // Predicated region
        $region17: #{tpu_custom_call.1} parent=11 // pred_check
          %p171 = pneg %p101
        $region18: #{tpu_custom_call.1} parent=11 // pred_check_branch
          %173 = sbr.rel (%p171) target = $region20
        $region19: #{tpu_custom_call.1} parent=11 // pred_region
          _
        $region20: #{tpu_custom_call.1} parent=11 // pred_fallthru
          _
        // Predicated region
        $region21: #{tpu_custom_call.1} parent=11 // pred_check
          %p174 = pneg %p122
        $region22: #{tpu_custom_call.1} parent=11 // pred_check_branch
          %176 = sbr.rel (%p174) target = $region24
        $region23: #{tpu_custom_call.1} parent=11 // pred_region
          %s178 = ssub.s32 2048, 2048
          %179 = vsyncadd [#allocation3], %s178
          %s180 = sshll.u32 [#allocation2], 4
          %s181 = int_to_ptr.vmem [resolvable:$true] %s180
          %186 = dma.hbm_to_vmem [thread:$0]  %s3, 2048, %s181, [#allocation3], 128, 128, 8
        $region24: #{tpu_custom_call.1} parent=11 // pred_fallthru
          _
      $region12: #{tpu_custom_call.1} parent=5 // pred_fallthru
        _
      %p187 = scmp.lt.s32.totalorder %s14, 2
      // Predicated region
      $region25: #{tpu_custom_call.1} parent=5 // pred_check
        %p188 = pneg %p187
      $region26: #{tpu_custom_call.1} parent=5 // pred_check_branch
        %190 = sbr.rel (%p188) target = $region28
      $region27: #{tpu_custom_call.1} parent=5 // pred_region
        // Predicated region
        $region29: #{tpu_custom_call.1} parent=27 // pred_check
          %p191 = pneg %p48
        $region30: #{tpu_custom_call.1} parent=27 // pred_check_branch
          %193 = sbr.rel (%p191) target = $region32
        $region31: #{tpu_custom_call.1} parent=27 // pred_region
          %p194 = scmp.lt.s32.totalorder %s21, 1
          %s195 = scalar_select %p194, %s21, 1
          %p196 = scmp.lt.s32.totalorder %s22, 0
          %s197 = scalar_select %p196, %s22, 0
          %s198 = sadd.s32 %s197, %s195
          %s199 = smul.addr %s198, 8
          %s200 = scalar_lea.vmem %s0, %s199
        $region32: #{tpu_custom_call.1} parent=27 // pred_fallthru
          _
      $region28: #{tpu_custom_call.1} parent=5 // pred_fallthru
        _
      %p201 = scmp.le.s32.totalorder 1, %s14
      %p202 = scmp.lt.s32.totalorder %s14, 3
      %p203 = pnand %p201, %p202
      %p204 = pneg %p203
      // Predicated region
      $region33: #{tpu_custom_call.1} parent=5 // pred_check
        _
      $region34: #{tpu_custom_call.1} parent=5 // pred_check_branch
        %206 = sbr.rel (%p203) target = $region36
      $region35: #{tpu_custom_call.1} parent=5 // pred_region
        %s207 = ssub.s32 %s14, 1
        // Predicated region
        $region37: #{tpu_custom_call.1} parent=35 // pred_check
          %p208 = pneg %p122
        $region38: #{tpu_custom_call.1} parent=35 // pred_check_branch
          %210 = sbr.rel (%p208) target = $region40
        $region39: #{tpu_custom_call.1} parent=35 // pred_region
          %211 = dma.done [#allocation3], 2048
        $region40: #{tpu_custom_call.1} parent=35 // pred_fallthru
          _
        %p212 = scmp.lt.s32.totalorder %s23, 1
        %s213 = scalar_select %p212, %s23, 1
        %p214 = scmp.lt.s32.totalorder %s24, 0
        %s215 = scalar_select %p214, %s24, 0
        %s216 = sadd.s32 %s215, %s213
        %s217 = smul.addr %s216, 8
        %s218 = scalar_lea.vmem %s0, %s217
        %p219 = pneg %p54
        %p220 = pneg %p51
        %p221 = scmp.lt.s32.totalorder %s24, 0
        %s222 = scalar_select %p221, %s24, 0
        %s223 = smul.addr %s222, 3
        %s224 = smul.addr %s223, 8
        %s225 = scalar_lea.vmem %s1, %s224
        %p226 = pneg %p80
        %p227 = pneg %p77
        %p228 = pneg %p101
        %p229 = pneg %p98
        %p230 = pneg %p122
        %p231 = pneg %p119
        %p232 = pneg %p148
        %p233 = pneg %p145
        %s234 = sand.u32 %s135, 1
        %s235 = scalar_lea.sflag [#allocation4], %s234
        %s236 = sand.u32 %s135, 1
        %s237 = smul.addr %s236, 8
        %s238 = scalar_lea.vmem [#allocation5], %s237
        %p239 = scmp.lt.s32.totalorder %s23, 1
        %s240 = scalar_select %p239, %s23, 1
        %p241 = scmp.lt.s32.totalorder %s24, 0
        %s242 = scalar_select %p241, %s24, 0
        %s243 = sadd.s32 %s242, %s240
        %s244 = smul.addr %s243, 8
        %s245 = scalar_lea.vmem %s0, %s244
        %p246 = scmp.lt.s32.totalorder %s24, 0
        %s247 = scalar_select %p246, %s24, 0
        %s248 = smul.addr %s247, 3
        %s249 = smul.addr %s248, 8
        %s250 = scalar_lea.vmem %s1, %s249
        %v251 = vld [vmem:[%s245] sm:$0xff]
        %v252 = vld [vmem:[%s250] sm:$0xff]
        %v253 = vld [vmem:[%s250 + $0x8] sm:$0xff]
        %v254 = vld [vmem:[%s250 + $0x10] sm:$0xff]
        %v255 = vld [vmem:[%s2] sm:$0x7]
        %v257 = vlaneseq
        %v258 = vshrl.u32 %v257, 7
        %v259 = vsub.s32 0, %v258
        %v260 = vrot.slane %v255, %v259
        %v261 = vlaneseq
        %v262 = vshrl.u32 %v261, 7
        %v263 = vsub.s32 1, %v262
        %v264 = vrot.slane %v255, %v263
        %v265 = vlaneseq
        %v266 = vshrl.u32 %v265, 7
        %v267 = vsub.s32 2, %v266
        %v268 = vrot.slane %v255, %v267
        %vm272 = vcmask 64512
        %v274 = vsel %vm272, %v251, 0
        %276 = vmatprep.subr.mxu0 %v253
        %277 = vmatpush1.msra.mxu0 %v252
        %278 = vmatprep.subr.mxu0 0.0
        %279 = vmatpush1.msra.mxu0 0.0
        %280 = vmatprep.subr.mxu0 0.0
        %281 = vmatpush1.msra.mxu0 0.0
        %282 = vmatprep.subr.mxu0 0.0
        %283 = vmatpush1.msra.mxu0 0.0
        %284 = vmatprep.subr.mxu0 0.0
        %285 = vmatpush1.msra.mxu0 0.0
        %286 = vmatprep.subr.mxu0 0.0
        %287 = vmatpush1.msra.mxu0 0.0
        %288 = vmatprep.subr.mxu0 0.0
        %289 = vmatpush1.msra.mxu0 0.0
        %290 = vmatprep.subr.mxu0 0.0
        %291 = vmatpush1.msra.mxu0 0.0
        %292 = vmatprep.subr.mxu0 0.0
        %293 = vmatpush1.msra.mxu0 0.0
        %294 = vmatprep.subr.mxu0 0.0
        %295 = vmatpush1.msra.mxu0 0.0
        %296 = vmatprep.subr.mxu0 0.0
        %297 = vmatpush1.msra.mxu0 0.0
        %298 = vmatprep.subr.mxu0 0.0
        %299 = vmatpush1.msra.mxu0 0.0
        %300 = vmatprep.subr.mxu0 0.0
        %301 = vmatpush1.msra.mxu0 0.0
        %302 = vmatprep.subr.mxu0 0.0
        %303 = vmatpush1.msra.mxu0 0.0
        %304 = vmatprep.subr.mxu0 0.0
        %305 = vmatpush1.msra.mxu0 0.0
        %306 = vmatprep.subr.mxu0 0.0
        %307 = vmatpush1.msra.mxu0 0.0
        %308 = vmatprep.subr.mxu0 0.0
        %309 = vmatpush1.msra.mxu0 0.0
        %310 = vmatprep.subr.mxu0 0.0
        %311 = vmatpush1.msra.mxu0 0.0
        %312 = vmatprep.subr.mxu0 0.0
        %313 = vmatpush1.msra.mxu0 0.0
        %314 = vmatprep.subr.mxu0 0.0
        %315 = vmatpush1.msra.mxu0 0.0
        %316 = vmatprep.subr.mxu0 0.0
        %317 = vmatpush1.msra.mxu0 0.0
        %318 = vmatprep.subr.mxu0 0.0
        %319 = vmatpush1.msra.mxu0 0.0
        %320 = vmatprep.subr.mxu0 0.0
        %321 = vmatpush1.msra.mxu0 0.0
        %322 = vmatprep.subr.mxu0 0.0
        %323 = vmatpush1.msra.mxu0 0.0
        %324 = vmatprep.subr.mxu0 0.0
        %325 = vmatpush1.msra.mxu0 0.0
        %326 = vmatprep.subr.mxu0 0.0
        %327 = vmatpush1.msra.mxu0 0.0
        %328 = vmatprep.subr.mxu0 0.0
        %329 = vmatpush1.msra.mxu0 0.0
        %330 = vmatprep.subr.mxu0 0.0
        %331 = vmatpush1.msra.mxu0 0.0
        %332 = vmatprep.subr.mxu0 0.0
        %333 = vmatpush1.msra.mxu0 0.0
        %334 = vmatprep.subr.mxu0 0.0
        %335 = vmatpush1.msra.mxu0 0.0
        %336 = vmatprep.subr.mxu0 0.0
        %337 = vmatpush1.msra.mxu0 0.0
        %338 = vmatprep.subr.mxu0 0.0
        %339 = vmatpush1.msra.mxu0 0.0
        %340 = vmatprep.mubr.f32.mxu0 0.0
        %341 = vmatmul.mubr.f32.gmra.mrb[0].mxu0 %v274
        %v342 = vpop.f32.mrb[0].mxu0
        %v343 = vadd.f32 %v260, %v342
        %v344 = vpop.f32.mrb[0].mxu0
        %v345 = vadd.f32 %v264, %v344
        %346 = vdwg.mxu0
        %347 = vmatprep.subr.mxu0 0.0
        %348 = vmatpush1.msra.mxu0 %v254
        %349 = vmatprep.subr.mxu0 0.0
        %350 = vmatpush1.msra.mxu0 0.0
        %351 = vmatprep.subr.mxu0 0.0
        %352 = vmatpush1.msra.mxu0 0.0
        %353 = vmatprep.subr.mxu0 0.0
        %354 = vmatpush1.msra.mxu0 0.0
        %355 = vmatprep.subr.mxu0 0.0
        %356 = vmatpush1.msra.mxu0 0.0
        %357 = vmatprep.subr.mxu0 0.0
        %358 = vmatpush1.msra.mxu0 0.0
        %359 = vmatprep.subr.mxu0 0.0
        %360 = vmatpush1.msra.mxu0 0.0
        %361 = vmatprep.subr.mxu0 0.0
        %362 = vmatpush1.msra.mxu0 0.0
        %363 = vmatprep.subr.mxu0 0.0
        %364 = vmatpush1.msra.mxu0 0.0
        %365 = vmatprep.subr.mxu0 0.0
        %366 = vmatpush1.msra.mxu0 0.0
        %367 = vmatprep.subr.mxu0 0.0
        %368 = vmatpush1.msra.mxu0 0.0
        %369 = vmatprep.subr.mxu0 0.0
        %370 = vmatpush1.msra.mxu0 0.0
        %371 = vmatprep.subr.mxu0 0.0
        %372 = vmatpush1.msra.mxu0 0.0
        %373 = vmatprep.subr.mxu0 0.0
        %374 = vmatpush1.msra.mxu0 0.0
        %375 = vmatprep.subr.mxu0 0.0
        %376 = vmatpush1.msra.mxu0 0.0
        %377 = vmatprep.subr.mxu0 0.0
        %378 = vmatpush1.msra.mxu0 0.0
        %379 = vmatprep.subr.mxu0 0.0
        %380 = vmatpush1.msra.mxu0 0.0
        %381 = vmatprep.subr.mxu0 0.0
        %382 = vmatpush1.msra.mxu0 0.0
        %383 = vmatprep.subr.mxu0 0.0
        %384 = vmatpush1.msra.mxu0 0.0
        %385 = vmatprep.subr.mxu0 0.0
        %386 = vmatpush1.msra.mxu0 0.0
        %387 = vmatprep.subr.mxu0 0.0
        %388 = vmatpush1.msra.mxu0 0.0
        %389 = vmatprep.subr.mxu0 0.0
        %390 = vmatpush1.msra.mxu0 0.0
        %391 = vmatprep.subr.mxu0 0.0
        %392 = vmatpush1.msra.mxu0 0.0
        %393 = vmatprep.subr.mxu0 0.0
        %394 = vmatpush1.msra.mxu0 0.0
        %395 = vmatprep.subr.mxu0 0.0
        %396 = vmatpush1.msra.mxu0 0.0
        %397 = vmatprep.subr.mxu0 0.0
        %398 = vmatpush1.msra.mxu0 0.0
        %399 = vmatprep.subr.mxu0 0.0
        %400 = vmatpush1.msra.mxu0 0.0
        %401 = vmatprep.subr.mxu0 0.0
        %402 = vmatpush1.msra.mxu0 0.0
        %403 = vmatprep.subr.mxu0 0.0
        %404 = vmatpush1.msra.mxu0 0.0
        %405 = vmatprep.subr.mxu0 0.0
        %406 = vmatpush1.msra.mxu0 0.0
        %407 = vmatprep.subr.mxu0 0.0
        %408 = vmatpush1.msra.mxu0 0.0
        %409 = vmatprep.subr.mxu0 0.0
        %410 = vmatpush1.msra.mxu0 0.0
        %411 = vmatprep.mubr.f32.mxu0 0.0
        %412 = vmatmul.mubr.f32.gmra.mrb[0].mxu0 %v274
        %v413 = vpop.f32.mrb[0].mxu0
        %v414 = vadd.f32 %v268, %v413
        %v415 = vpop.f32.mrb[0].mxu0
        %416 = vdwg.mxu0
        %v417 = vld [vmem:[#allocation2] sm:$0xff]
        %v418 = vld [vmem:[#allocation2 + $0x8] sm:$0xff]
        %v419 = vld [vmem:[#allocation2 + $0x10] sm:$0xff]
        %v420 = vld [vmem:[#allocation2 + $0x18] sm:$0xff]
        %v421 = vld [vmem:[#allocation2 + $0x20] sm:$0xff]
        %v422 = vld [vmem:[#allocation2 + $0x28] sm:$0xff]
        %v423 = vld [vmem:[#allocation2 + $0x30] sm:$0xff]
        %v424 = vld [vmem:[#allocation2 + $0x38] sm:$0xff]
        %v425 = vld [vmem:[#allocation2 + $0x40] sm:$0xff]
        %v426 = vld [vmem:[#allocation2 + $0x48] sm:$0xff]
        %v427 = vld [vmem:[#allocation2 + $0x50] sm:$0xff]
        %v428 = vld [vmem:[#allocation2 + $0x58] sm:$0xff]
        %v429 = vld [vmem:[#allocation2 + $0x60] sm:$0xff]
        %v430 = vld [vmem:[#allocation2 + $0x68] sm:$0xff]
        %v431 = vld [vmem:[#allocation2 + $0x70] sm:$0xff]
        %v432 = vld [vmem:[#allocation2 + $0x78] sm:$0xff]
        %433 = vmatprep.subr.mxu0 0.0
        %434 = vmatpush1.msra.mxu0 %v417
        %435 = vmatprep.subr.mxu0 0.0
        %436 = vmatpush1.msra.mxu0 %v418
        %437 = vmatprep.subr.mxu0 0.0
        %438 = vmatpush1.msra.mxu0 %v419
        %439 = vmatprep.subr.mxu0 0.0
        %440 = vmatpush1.msra.mxu0 %v420
        %441 = vmatprep.subr.mxu0 0.0
        %442 = vmatpush1.msra.mxu0 %v421
        %443 = vmatprep.subr.mxu0 0.0
        %444 = vmatpush1.msra.mxu0 %v422
        %445 = vmatprep.subr.mxu0 0.0
        %446 = vmatpush1.msra.mxu0 %v423
        %447 = vmatprep.subr.mxu0 0.0
        %448 = vmatpush1.msra.mxu0 %v424
        %449 = vmatprep.subr.mxu0 0.0
        %450 = vmatpush1.msra.mxu0 %v425
        %451 = vmatprep.subr.mxu0 0.0
        %452 = vmatpush1.msra.mxu0 %v426
        %453 = vmatprep.subr.mxu0 0.0
        %454 = vmatpush1.msra.mxu0 %v427
        %455 = vmatprep.subr.mxu0 0.0
        %456 = vmatpush1.msra.mxu0 %v428
        %457 = vmatprep.subr.mxu0 0.0
        %458 = vmatpush1.msra.mxu0 %v429
        %459 = vmatprep.subr.mxu0 0.0
        %460 = vmatpush1.msra.mxu0 %v430
        %461 = vmatprep.subr.mxu0 0.0
        %462 = vmatpush1.msra.mxu0 %v431
        %463 = vmatprep.subr.mxu0 0.0
        %464 = vmatpush1.msra.mxu0 %v432
        %465 = vmatprep.subr.mxu0 0.0
        %466 = vmatpush1.msra.mxu0 0.0
        %467 = vmatprep.subr.mxu0 0.0
        %468 = vmatpush1.msra.mxu0 0.0
        %469 = vmatprep.subr.mxu0 0.0
        %470 = vmatpush1.msra.mxu0 0.0
        %471 = vmatprep.subr.mxu0 0.0
        %472 = vmatpush1.msra.mxu0 0.0
        %473 = vmatprep.subr.mxu0 0.0
        %474 = vmatpush1.msra.mxu0 0.0
        %475 = vmatprep.subr.mxu0 0.0
        %476 = vmatpush1.msra.mxu0 0.0
        %477 = vmatprep.subr.mxu0 0.0
        %478 = vmatpush1.msra.mxu0 0.0
        %479 = vmatprep.subr.mxu0 0.0
        %480 = vmatpush1.msra.mxu0 0.0
        %481 = vmatprep.subr.mxu0 0.0
        %482 = vmatpush1.msra.mxu0 0.0
        %483 = vmatprep.subr.mxu0 0.0
        %484 = vmatpush1.msra.mxu0 0.0
        %485 = vmatprep.subr.mxu0 0.0
        %486 = vmatpush1.msra.mxu0 0.0
        %487 = vmatprep.subr.mxu0 0.0
        %488 = vmatpush1.msra.mxu0 0.0
        %489 = vmatprep.subr.mxu0 0.0
        %490 = vmatpush1.msra.mxu0 0.0
        %491 = vmatprep.subr.mxu0 0.0
        %492 = vmatpush1.msra.mxu0 0.0
        %493 = vmatprep.subr.mxu0 0.0
        %494 = vmatpush1.msra.mxu0 0.0
        %495 = vmatprep.subr.mxu0 0.0
        %496 = vmatpush1.msra.mxu0 0.0
        %497 = vmatprep.mubr.f32.mxu0 0.0
        %498 = vmatmul.mubr.f32.gmra.mrb[0].mxu0 %v343
        %v499 = vpop.f32.mrb[0].mxu0
        %v500 = vadd.f32 0.0, %v499
        %v501 = vpop.f32.mrb[0].mxu0
        %502 = vdwg.mxu0
        %v503 = vmul.f32 %v500, %v345
        %v504 = vmul.f32 %v503, 0.5
        %505 = vmax.xlane.f32.xlu0 %v504
        %v506 = vpop.xlane.xlu0 %505
        %v507 = vsub.f32 %v504, %v506
        %v508 = vmul.f32 %v507, 1.442695
        %v509 = vpow.pop %v508
        %510 = vmatprep.subr.mxu0 0.0
        %511 = vmatpush1.msra.mxu0 %v417
        %512 = vmatprep.subr.mxu0 0.0
        %513 = vmatpush1.msra.mxu0 %v418
        %514 = vmatprep.subr.mxu0 0.0
        %515 = vmatpush1.msra.mxu0 %v419
        %516 = vmatprep.subr.mxu0 0.0
        %517 = vmatpush1.msra.mxu0 %v420
        %518 = vmatprep.subr.mxu0 0.0
        %519 = vmatpush1.msra.mxu0 %v421
        %520 = vmatprep.subr.mxu0 0.0
        %521 = vmatpush1.msra.mxu0 %v422
        %522 = vmatprep.subr.mxu0 0.0
        %523 = vmatpush1.msra.mxu0 %v423
        %524 = vmatprep.subr.mxu0 0.0
        %525 = vmatpush1.msra.mxu0 %v424
        %526 = vmatprep.subr.mxu0 0.0
        %527 = vmatpush1.msra.mxu0 %v425
        %528 = vmatprep.subr.mxu0 0.0
        %529 = vmatpush1.msra.mxu0 %v426
        %530 = vmatprep.subr.mxu0 0.0
        %531 = vmatpush1.msra.mxu0 %v427
        %532 = vmatprep.subr.mxu0 0.0
        %533 = vmatpush1.msra.mxu0 %v428
        %534 = vmatprep.subr.mxu0 0.0
        %535 = vmatpush1.msra.mxu0 %v429
        %536 = vmatprep.subr.mxu0 0.0
        %537 = vmatpush1.msra.mxu0 %v430
        %538 = vmatprep.subr.mxu0 0.0
        %539 = vmatpush1.msra.mxu0 %v431
        %540 = vmatprep.subr.mxu0 0.0
        %541 = vmatpush1.msra.mxu0 %v432
        %542 = vmatprep.subr.mxu0 0.0
        %543 = vmatpush1.msra.mxu0 0.0
        %544 = vmatprep.subr.mxu0 0.0
        %545 = vmatpush1.msra.mxu0 0.0
        %546 = vmatprep.subr.mxu0 0.0
        %547 = vmatpush1.msra.mxu0 0.0
        %548 = vmatprep.subr.mxu0 0.0
        %549 = vmatpush1.msra.mxu0 0.0
        %550 = vmatprep.subr.mxu0 0.0
        %551 = vmatpush1.msra.mxu0 0.0
        %552 = vmatprep.subr.mxu0 0.0
        %553 = vmatpush1.msra.mxu0 0.0
        %554 = vmatprep.subr.mxu0 0.0
        %555 = vmatpush1.msra.mxu0 0.0
        %556 = vmatprep.subr.mxu0 0.0
        %557 = vmatpush1.msra.mxu0 0.0
        %558 = vmatprep.subr.mxu0 0.0
        %559 = vmatpush1.msra.mxu0 0.0
        %560 = vmatprep.subr.mxu0 0.0
        %561 = vmatpush1.msra.mxu0 0.0
        %562 = vmatprep.subr.mxu0 0.0
        %563 = vmatpush1.msra.mxu0 0.0
        %564 = vmatprep.subr.mxu0 0.0
        %565 = vmatpush1.msra.mxu0 0.0
        %566 = vmatprep.subr.mxu0 0.0
        %567 = vmatpush1.msra.mxu0 0.0
        %568 = vmatprep.subr.mxu0 0.0
        %569 = vmatpush1.msra.mxu0 0.0
        %570 = vmatprep.subr.mxu0 0.0
        %571 = vmatpush1.msra.mxu0 0.0
        %572 = vmatprep.subr.mxu0 0.0
        %573 = vmatpush1.msra.mxu0 0.0
        %574 = vmatprep.mubr.f32.mxu0 0.0
        %575 = vmatmul.mubr.f32.gmra.mrb[0].mxu0 %v509
        %v576 = vpop.f32.mrb[0].mxu0
        %v577 = vadd.f32 0.0, %v576
        %v578 = vpop.f32.mrb[0].mxu0
        %579 = vdwg.mxu0
        %vm580 = vcmp.gt.f32.partialorder %v577, 0.0
        %v581 = vrcp.pop %v577
        %v582 = vmul.f32 %v577, %v581
        %v583 = vsel %vm580, %v582, 1.0
        %v584 = vmul.f32 %v583, %v414
        %585 = vst [vmem:[%s238] sm:$0xff] %v584
        %s586 = sand.u32 %s135, 1
        %s587 = scalar_lea.sflag [#allocation4], %s586
        %s588 = sand.u32 %s135, 1
        %s589 = smul.addr %s588, 8
        %s590 = scalar_lea.vmem [#allocation5], %s589
        // Predicated region
        $region41: #{tpu_custom_call.1} parent=35 // pred_check
          %p591 = pneg %p145
        $region42: #{tpu_custom_call.1} parent=35 // pred_check_branch
          %593 = sbr.rel (%p591) target = $region44
        $region43: #{tpu_custom_call.1} parent=35 // pred_region
          %s595 = ssub.s32 128, 128
          %596 = vsyncadd %s587, %s595
          %s597 = smul.addr %s23, 128
          %s598 = scalar_lea.hbm %s4, %s597
          %s600 = sshll.u32 %s590, 4
          %s601 = int_to_ptr.vmem [resolvable:$true] %s600
          %603 = dma.vmem_to_hbm [thread:$0]  %s601, 128, %s598, %s587
        $region44: #{tpu_custom_call.1} parent=35 // pred_fallthru
          _
      $region36: #{tpu_custom_call.1} parent=5 // pred_fallthru
        _
      %p604 = scmp.le.s32.totalorder 2, %s14
      // Predicated region
      $region45: #{tpu_custom_call.1} parent=5 // pred_check
        %p605 = pneg %p604
      $region46: #{tpu_custom_call.1} parent=5 // pred_check_branch
        %607 = sbr.rel (%p605) target = $region48
      $region47: #{tpu_custom_call.1} parent=5 // pred_region
        %s608 = ssub.s32 %s14, 2
        // Predicated region
        $region49: #{tpu_custom_call.1} parent=47 // pred_check
          %p609 = pneg %p151
        $region50: #{tpu_custom_call.1} parent=47 // pred_check_branch
          %611 = sbr.rel (%p609) target = $region52
        $region51: #{tpu_custom_call.1} parent=47 // pred_region
          %s612 = sand.u32 %s136, 1
          %s613 = scalar_lea.sflag [#allocation4], %s612
          %s614 = sand.u32 %s136, 1
          %s615 = smul.addr %s614, 8
          %s616 = scalar_lea.vmem [#allocation5], %s615
          %617 = dma.done %s613, 128
        $region52: #{tpu_custom_call.1} parent=47 // pred_fallthru
          _
      $region48: #{tpu_custom_call.1} parent=5 // pred_fallthru
        _
    $region6: #{tpu_custom_call.1} parent=1 // loop_footer
      %s18 = sadd.s32 1, %s14
    $region7: #{tpu_custom_call.1} parent=1 // loop_footer_branch
      %13 = sbr.rel target = $region3
    $region8: #{tpu_custom_call.1} parent=1 // loop_exit
      _
    %618 = vsyncpa [#allocation3], 1
    %s619 = scalar_lea.sflag [#allocation3], 1
    %620 = vsyncpa %s619, 1
    %621 = vsyncpa [#allocation4], 1
    %s622 = scalar_lea.sflag [#allocation4], 1
    %623 = vsyncpa %s622, 1

</llo_original>
